<compile_context>
chip_gen: v5e
topology: v5e:2x2
jax: 0.10.0
libtpu: 0.0.40
codegen_flags: <defaults>
</compile_context>

<pallas_src>
import jax
import jax.numpy as jnp
from jax.experimental import pallas as pl
from jax.experimental.pallas import tpu as pltpu


# ----------------------------------------------------------------------------
# Small integer helpers (trace-time only).
# ----------------------------------------------------------------------------
def _cdiv(a, b):
    return -(-a // b)


def _round_up(a, b):
    return _cdiv(a, b) * b


# ----------------------------------------------------------------------------
# Per-generation sizing policy.
# ----------------------------------------------------------------------------
def _hw_params():
    """Generation-dependent tiling policy.

    Returns a dict with:
      step_bytes   target pred+tgt HBM bytes streamed per grid step
      vmem_budget  budget for double-buffered blocks + accumulator
      vmem_limit   value passed to CompilerParams.vmem_limit_bytes
      num_tc       TensorCores to shard the leading "parallel" chunk axis over
      small_bytes  input-byte threshold below which the monolithic path is used
    """
    kind = ""
    try:
        kind = jax.devices()[0].device_kind.lower()
    except Exception:
        pass
    if "v7" in kind:
        # ~3.2 TB/s per TC, 64 MiB VMEM per TC, 2 TCs.
        return dict(step_bytes=8 << 20, vmem_budget=40 << 20, vmem_limit=48 << 20,
                    num_tc=2, small_bytes=8 << 20)
    if "v6" in kind:
        return dict(step_bytes=4 << 20, vmem_budget=24 << 20, vmem_limit=48 << 20,
                    num_tc=1, small_bytes=8 << 20)
    if "v5 lite" in kind or "v5e" in kind or "v5litepod" in kind:
        return dict(step_bytes=2 << 20, vmem_budget=16 << 20, vmem_limit=32 << 20,
                    num_tc=1, small_bytes=4 << 20)
    if "v5" in kind or "v4" in kind:      # v5p / v4 megacore (2 TCs)
        return dict(step_bytes=2 << 20, vmem_budget=24 << 20, vmem_limit=48 << 20,
                    num_tc=2, small_bytes=4 << 20)
    # Unknown device (incl. interpret mode): v6e-ish defaults.
    return dict(step_bytes=4 << 20, vmem_budget=24 << 20, vmem_limit=48 << 20,
                num_tc=1, small_bytes=8 << 20)


# ----------------------------------------------------------------------------
# Small-input fast path: everything in VMEM, single grid=() invocation.
# Inputs are already in the dense (rows, 128) layout, so no sublane waste.
# ----------------------------------------------------------------------------
def _field_loss_small_kernel(v_ref, pred_ref, tgt_ref, out_ref):
    # v_ref: [R, 128]; pred_ref/tgt_ref: [bsz, R, 128]; out_ref: [1, 1]
    diff = pred_ref[...].astype(jnp.float32) - tgt_ref[...].astype(jnp.float32)
    total = jnp.sum(diff * v_ref[...].astype(jnp.float32))
    bsz = pred_ref.shape[0]
    avg = total / jnp.float32(bsz)
    out_ref[...] = jnp.full((1, 1), -avg * avg, dtype=out_ref.dtype)


def _field_loss_small(v2, pred3, tgt3):
    out = pl.pallas_call(
        _field_loss_small_kernel,
        out_shape=jax.ShapeDtypeStruct((1, 1), jnp.float32),
        grid_spec=pl.GridSpec(
            grid=(),
            in_specs=[
                pl.BlockSpec(memory_space=pltpu.VMEM),   # v      [R, 128]
                pl.BlockSpec(memory_space=pltpu.VMEM),   # pred   [bsz, R, 128]
                pl.BlockSpec(memory_space=pltpu.VMEM),   # target [bsz, R, 128]
            ],
            out_specs=pl.BlockSpec(memory_space=pltpu.VMEM),
        ),
    )(v2, pred3, tgt3)
    return out[0, 0]


# ----------------------------------------------------------------------------
# Tiled / pipelined streaming path (HBM-bandwidth bound).
#   grid = (nchunks [parallel], kpc [row tiles, arbitrary], bsz [arbitrary])
# Batch is the innermost axis so consecutive steps reuse the same v block and
# Pallas skips its re-DMA.  The f32 accumulator is block-shaped; the single
# cross-lane reduce happens only on the last step of each chunk.
# ----------------------------------------------------------------------------
def _field_loss_tiled_kernel(v_ref, pred_ref, tgt_ref, partial_ref, acc_ref):
    k = pl.program_id(1)
    b = pl.program_id(2)

    @pl.when(jnp.logical_and(k == 0, b == 0))
    def _init():
        acc_ref[...] = jnp.zeros_like(acc_ref)

    # Steady state: pure VPU work (cast + sub + mul + add), hidden under DMA.
    diff = pred_ref[...].astype(jnp.float32) - tgt_ref[...].astype(jnp.float32)
    acc_ref[...] += diff * v_ref[...].astype(jnp.float32)

    @pl.when(jnp.logical_and(k == pl.num_programs(1) - 1,
                             b == pl.num_programs(2) - 1))
    def _finalize():
        total = jnp.sum(acc_ref[...])
        partial_ref[...] = jnp.full((1, 1, 128), total, dtype=partial_ref.dtype)


def _choose_tile_rows(R, nchunks, itemsize, v_itemsize, step_bytes, vmem_budget):
    """Pick the per-step row-tile size (rows of 128 lanes, multiple of 8)."""
    # Per-step pred+tgt HBM bytes = 2 * tile_rows * 128 * itemsize.
    target = step_bytes // (256 * itemsize)
    # VMEM: pred/tgt double-buffered + v double-buffered + f32 accumulator.
    bytes_per_row = 128 * (4 * itemsize + 2 * v_itemsize + 4)
    vmax = vmem_budget // bytes_per_row
    cap = _round_up(_cdiv(R, nchunks), 8)          # never exceed one chunk's rows
    t = max(8, min(target, vmax, cap))
    t = (t // 8) * 8
    # Prefer an exact-divisor tile within 2x of the target (avoids a pad copy).
    s = t
    while s >= max(8, t // 2):
        if R % (s * nchunks) == 0:
            return s
        s -= 8
    return t


def _field_loss_tiled(v2, pred3, tgt3, bsz, nchunks, kpc, tile_rows,
                      vmem_limit, itemsize, v_itemsize):
    R_pad = pred3.shape[1]

    cost = pl.CostEstimate(
        flops=3 * bsz * R_pad * 128,
        transcendentals=0,
        bytes_accessed=(2 * bsz * itemsize + v_itemsize) * R_pad * 128
                       + nchunks * 512,
    )

    partials = pl.pallas_call(
        _field_loss_tiled_kernel,
        out_shape=jax.ShapeDtypeStruct((nchunks, 1, 128), jnp.float32),
        grid_spec=pltpu.PrefetchScalarGridSpec(
            num_scalar_prefetch=0,
            grid=(nchunks, kpc, bsz),
            in_specs=[
                # v: ignores the batch axis -> re-DMA skipped across b steps.
                pl.BlockSpec((tile_rows, 128),
                             lambda c, k, b: (c * kpc + k, 0)),
                # pred / target: batch dim squeezed out of the kernel view.
                pl.BlockSpec((None, tile_rows, 128),
                             lambda c, k, b: (b, c * kpc + k, 0)),
                pl.BlockSpec((None, tile_rows, 128),
                             lambda c, k, b: (b, c * kpc + k, 0)),
            ],
            out_specs=pl.BlockSpec((1, 1, 128), lambda c, k, b: (c, 0, 0)),
            scratch_shapes=[pltpu.VMEM((tile_rows, 128), jnp.float32)],
        ),
        compiler_params=pltpu.CompilerParams(
            dimension_semantics=("parallel", "arbitrary", "arbitrary"),
            vmem_limit_bytes=vmem_limit,
        ),
        cost_estimate=cost,
    )(v2, pred3, tgt3)

    avg = jnp.sum(partials[:, 0, 0]) / jnp.float32(bsz)
    return -avg * avg


# ----------------------------------------------------------------------------
# Public wrapper (dispatch + dense-layout plumbing).
# ----------------------------------------------------------------------------
def field_loss(class2target_v_a, model_pred_latents, model_target_latents,
               *, force_tiled=False, tile_d=None):
    """Pallas implementation of FieldLoss.forward. Returns a scalar float32."""
    d = int(class2target_v_a.shape[0])
    n = int(model_pred_latents.shape[0])
    if d == 0 or n % d != 0:
        raise ValueError(
            f"flat latent length {n} is not a multiple of the field-vector "
            f"length {d}; the reshape in FieldLoss would silently mismatch")
    bsz = n // d

    hw = _hw_params()
    itemsize = jnp.dtype(model_pred_latents.dtype).itemsize
    v_itemsize = jnp.dtype(class2target_v_a.dtype).itemsize

    # Free metadata reshapes; dtypes stay native through HBM (the f32 cast
    # happens on vregs inside the kernel).
    pred2d = model_pred_latents.reshape(bsz, d)
    tgt2d = model_target_latents.reshape(bsz, d)
    v2d = class2target_v_a.reshape(1, d)

    R = _cdiv(d, 128)                       # feature rows of 128 lanes per batch

    # ---------------- small-input fast path -------------------------------
    # Dense layout has no sublane padding, so raw input bytes is the right
    # measure for the monolithic-path threshold.
    input_bytes = (2 * bsz * itemsize + v_itemsize) * R * 128
    if not force_tiled and input_bytes <= hw["small_bytes"]:
        cols = R * 128
        if cols != d:
            pad = cols - d                  # zero padding contributes 0
            pred2d = jnp.pad(pred2d, ((0, 0), (0, pad)))
            tgt2d = jnp.pad(tgt2d, ((0, 0), (0, pad)))
            v2d = jnp.pad(v2d, ((0, 0), (0, pad)))
        return _field_loss_small(v2d.reshape(R, 128),
                                 pred2d.reshape(bsz, R, 128),
                                 tgt2d.reshape(bsz, R, 128))

    # ---------------- tiled streaming path --------------------------------
    nchunks = 2 if (hw["num_tc"] >= 2 and R >= 16) else 1

    if tile_d is not None:
        tile_d = int(tile_d)
        if tile_d <= 0 or tile_d % 1024 != 0:
            raise ValueError("tile_d must be a positive multiple of 1024")
        tile_rows = tile_d // 128
    else:
        tile_rows = _choose_tile_rows(R, nchunks, itemsize, v_itemsize,
                                      hw["step_bytes"], hw["vmem_budget"])

    # Keep the step count, then shrink the tile just enough to minimize any
    # zero padding of the row axis (< 8 rows per grid step).
    kpc = _cdiv(R, nchunks * tile_rows)
    tile_rows = _round_up(_cdiv(R, nchunks * kpc), 8)
    R_pad = nchunks * kpc * tile_rows

    cols = R_pad * 128
    if cols != d:
        pad = cols - d                      # zero padding contributes 0
        pred2d = jnp.pad(pred2d, ((0, 0), (0, pad)))
        tgt2d = jnp.pad(tgt2d, ((0, 0), (0, pad)))
        v2d = jnp.pad(v2d, ((0, 0), (0, pad)))

    pred3 = pred2d.reshape(bsz, R_pad, 128)
    tgt3 = tgt2d.reshape(bsz, R_pad, 128)
    v2 = v2d.reshape(R_pad, 128)

    return _field_loss_tiled(v2, pred3, tgt3, bsz, nchunks, kpc, tile_rows,
                             hw["vmem_limit"], itemsize, v_itemsize)


# ----------------------------------------------------------------------------
# Pure-JAX reference mirroring the PyTorch loop exactly.
# ----------------------------------------------------------------------------
def field_loss_ref(class2target_v_a, model_pred_latents, model_target_latents):
    d = class2target_v_a.shape[0]
    bsz = model_pred_latents.shape[0] // d
    P = model_pred_latents.reshape(bsz, -1).astype(jnp.float32)
    T = model_target_latents.reshape(bsz, -1).astype(jnp.float32)
    v = class2target_v_a.astype(jnp.float32)
    avg = jnp.float32(0.0)
    for b in range(bsz):
        avg = avg + jnp.dot(P[b] - T[b], v) / bsz
    return -avg * avg


if __name__ == "__main__":
    key = jax.random.PRNGKey(0)

    def make(bsz, D, dtype, key):
        k1, k2, k3, key = jax.random.split(key, 4)
        v = jax.random.normal(k1, (D,), dtype=jnp.float32).astype(dtype)
        p = jax.random.normal(k2, (bsz * D,), dtype=jnp.float32).astype(dtype)
        t = jax.random.normal(k3, (bsz * D,), dtype=jnp.float32).astype(dtype)
        return v, p, t, key

    # --- Test 1: small latents (bsz=2, C=4, H=W=16) -> monolithic path ------
    v, p, t, key = make(2, 4 * 16 * 16, jnp.float32, key)
    out = jax.block_until_ready(field_loss(v, p, t))
    ref = field_loss_ref(v, p, t)
    assert jnp.allclose(out, ref, rtol=1e-4, atol=1e-2), (out, ref)

    # --- Test 2: small path, feature count not lane-aligned (D=1000) --------
    v, p, t, key = make(2, 1000, jnp.float32, key)
    out = jax.block_until_ready(field_loss(v, p, t))
    ref = field_loss_ref(v, p, t)
    assert jnp.allclose(out, ref, rtol=1e-4, atol=1e-2), (out, ref)

    # --- Test 3: forced tiled streaming path, explicit tile ------------------
    v, p, t, key = make(2, 4 * 64 * 64, jnp.float32, key)          # D = 16384
    out = jax.block_until_ready(field_loss(v, p, t, force_tiled=True, tile_d=2048))
    ref = field_loss_ref(v, p, t)
    assert jnp.allclose(out, ref, rtol=1e-4, atol=1e-2), (out, ref)

    # --- Test 4: tiled path with awkward row count (row zero-padding path) ---
    v, p, t, key = make(2, 97 * 128, jnp.float32, key)              # R = 97
    out = jax.block_until_ready(field_loss(v, p, t, force_tiled=True, tile_d=2048))
    ref = field_loss_ref(v, p, t)
    assert jnp.allclose(out, ref, rtol=1e-4, atol=1e-2), (out, ref)

    # --- Test 5: bf16 latents streamed natively, automatic tiling policy -----
    v, p, t, key = make(2, 4 * 64 * 64, jnp.bfloat16, key)
    out = jax.block_until_ready(field_loss(v, p, t, force_tiled=True))
    ref = field_loss_ref(v, p, t)
    assert jnp.allclose(out, ref, rtol=5e-2, atol=5e-2), (out, ref)

    print("KERNEL_OK")
</pallas_src>

<mosaic_0001>
module attributes {stable_mosaic.version = 11 : i64} {
  func.func @_field_loss_small_kernel(%arg0: memref<8x128xf32, #tpu.memory_space<vmem>>, %arg1: memref<2x8x128xf32, #tpu.memory_space<vmem>>, %arg2: memref<2x8x128xf32, #tpu.memory_space<vmem>>, %arg3: memref<1x1xf32, #tpu.memory_space<vmem>>) attributes {dimension_semantics = [], scalar_prefetch = 0 : i64, scratch_operands = 0 : i64, tpu.core_type = #tpu.core_type<tc>} {
    %c0 = arith.constant 0 : index
    %c0_0 = arith.constant 0 : index
    %c0_1 = arith.constant 0 : index
    %0 = vector.load %arg1[%c0, %c0_0, %c0_1] : memref<2x8x128xf32, #tpu.memory_space<vmem>>, vector<2x8x128xf32>
    %c0_2 = arith.constant 0 : index
    %c0_3 = arith.constant 0 : index
    %c0_4 = arith.constant 0 : index
    %1 = vector.load %arg2[%c0_2, %c0_3, %c0_4] : memref<2x8x128xf32, #tpu.memory_space<vmem>>, vector<2x8x128xf32>
    %2 = arith.subf %0, %1 : vector<2x8x128xf32>
    %c0_5 = arith.constant 0 : index
    %c0_6 = arith.constant 0 : index
    %3 = vector.load %arg0[%c0_5, %c0_6] : memref<8x128xf32, #tpu.memory_space<vmem>>, vector<8x128xf32>
    %4 = vector.shape_cast %3 : vector<8x128xf32> to vector<1x8x128xf32>
    %5 = vector.broadcast %4 : vector<1x8x128xf32> to vector<2x8x128xf32>
    %6 = arith.mulf %2, %5 : vector<2x8x128xf32>
    %7 = vector.shape_cast %6 : vector<2x8x128xf32> to vector<1x2x8x128xf32>
    %cst = arith.constant dense<0.000000e+00> : vector<1xf32>
    %8 = vector.multi_reduction <add>, %7, %cst [1, 2, 3] : vector<1x2x8x128xf32> to vector<1xf32>
    %9 = vector.shape_cast %8 : vector<1xf32> to vector<1x1x1x1xf32>
    %10 = vector.extract %9[0, 0, 0, 0] : f32 from vector<1x1x1x1xf32>
    %cst_7 = arith.constant 2.000000e+00 : f32
    %11 = arith.divf %10, %cst_7 : f32
    %cst_8 = arith.constant 0.000000e+00 : f32
    %12 = arith.subf %cst_8, %11 : f32
    %13 = arith.mulf %12, %11 : f32
    %14 = vector.broadcast %13 : f32 to vector<1x1xf32>
    %c0_9 = arith.constant 0 : index
    %c0_10 = arith.constant 0 : index
    %15 = vector.load %arg3[%c0_9, %c0_10] : memref<1x1xf32, #tpu.memory_space<vmem>>, vector<1x1xf32>
    tpu.vector_store %arg3[%c0_9, %c0_10], %14 {strides = array<i32>} : memref<1x1xf32, #tpu.memory_space<vmem>>, vector<1x1xf32>,
    return
  }
}

</mosaic_0001>

<llo_original>
// kernel: tpu_custom_call.1
$region0: #{tpu_custom_call.1}
  #allocation0 [shape = 'u32[]', space=smem, size = 0x4, offset = 0x4, fixed_abs, tag = 'smem constant byte address 0x4 - core index']
  #allocation1 [shape = 'u32[72,128]{1,0:T(1,128)}', space=vmem, size = 0x9000, scoped, tag = 'internal scratch']
  %s0 = inlined_call_operand.hbm [shape: f32[8,128], index: 0, kind: input, shape index: {}]
  %s1 = inlined_call_operand.hbm [shape: f32[2,8,128], index: 1, kind: input, shape index: {}]
  %s2 = inlined_call_operand.hbm [shape: f32[2,8,128], index: 2, kind: input, shape index: {}]
  %s3 = inlined_call_operand.hbm [shape: f32[1,1], index: 3, kind: output, shape index: {}]
  %s4 = sld [smem:[#allocation0]]
  $region34: #{tpu_custom_call.1} parent=0
    _
  %s6 = ssub.s32 1, %s4
  %s7 = scalar_select 0, %s6, %s4
  $region1: #{tpu_custom_call.1} parent=0
    #allocation2 [shape = 'u8[4096]{0}', space=vmem, size = 0x1000, scoped, tag = 'input window, operand 0, single buffered']
    #allocation3 [shape = 's32[1]{0}', space=sflag, size = 0x4, scoped, tag = 'scoped memory for tpu_custom_call.1']
    #allocation4 [shape = 's32[1]{0}', space=sflag, size = 0x4, scoped, tag = 'scoped memory for tpu_custom_call.1']
    #allocation5 [shape = 'u8[8192]{0}', space=vmem, size = 0x2000, scoped, tag = 'input window, operand 1, single buffered']
    #allocation6 [shape = 's32[1]{0}', space=sflag, size = 0x4, scoped, tag = 'scoped memory for tpu_custom_call.1']
    #allocation7 [shape = 'u8[8192]{0}', space=vmem, size = 0x2000, scoped, tag = 'input window, operand 2, single buffered']
    #allocation8 [shape = 'u8[512]{0}', space=vmem, size = 0x400, scoped, tag = 'output window, operand 0, single buffered']
    %8 = vsyncpa [#allocation3], 0
    %9 = vsyncpa [#allocation6], 0
    %10 = vsyncpa [#allocation4], 0
    // Predicated region
    $region2: #{tpu_custom_call.1} parent=1 // pred_check
      _
    $region3: #{tpu_custom_call.1} parent=1 // pred_check_branch
      %12 = sbr.rel (0) target = $region5
    $region4: #{tpu_custom_call.1} parent=1 // pred_region
      %14 = vsyncadd [#allocation3], 0
      %s16 = sshll.u32 %s0, 4
      %s17 = int_to_ptr.hbm [resolvable:$true] %s16
      %s18 = sshll.u32 [#allocation2], 4
      %s19 = int_to_ptr.vmem [resolvable:$true] %s18
      %21 = dma.hbm_to_vmem [thread:$0]  %s17, 128, %s19, [#allocation3]
    $region5: #{tpu_custom_call.1} parent=1 // pred_fallthru
      _
    // Predicated region
    $region6: #{tpu_custom_call.1} parent=1 // pred_check
      _
    $region7: #{tpu_custom_call.1} parent=1 // pred_check_branch
      %23 = sbr.rel (0) target = $region9
    $region8: #{tpu_custom_call.1} parent=1 // pred_region
      %25 = vsyncadd [#allocation6], 0
      %s26 = sshll.u32 %s1, 4
      %s27 = int_to_ptr.hbm [resolvable:$true] %s26
      %s28 = sshll.u32 [#allocation5], 4
      %s29 = int_to_ptr.vmem [resolvable:$true] %s28
      %34 = dma.hbm_to_vmem [thread:$0]  %s27, 256, %s29, [#allocation6], 128, 128, 8
    $region9: #{tpu_custom_call.1} parent=1 // pred_fallthru
      _
    // Predicated region
    $region10: #{tpu_custom_call.1} parent=1 // pred_check
      _
    $region11: #{tpu_custom_call.1} parent=1 // pred_check_branch
      %36 = sbr.rel (0) target = $region13
    $region12: #{tpu_custom_call.1} parent=1 // pred_region
      %38 = vsyncadd [#allocation6], 0
      %s39 = sshll.u32 %s2, 4
      %s40 = int_to_ptr.hbm [resolvable:$true] %s39
      %s41 = sshll.u32 [#allocation7], 4
      %s42 = int_to_ptr.vmem [resolvable:$true] %s41
      %47 = dma.hbm_to_vmem [thread:$0]  %s40, 256, %s42, [#allocation6], 128, 128, 8
    $region13: #{tpu_custom_call.1} parent=1 // pred_fallthru
      _
    // Predicated region
    $region14: #{tpu_custom_call.1} parent=1 // pred_check
      _
    $region15: #{tpu_custom_call.1} parent=1 // pred_check_branch
      %49 = sbr.rel (0) target = $region17
    $region16: #{tpu_custom_call.1} parent=1 // pred_region
      %51 = dma.done [#allocation3], 128
    $region17: #{tpu_custom_call.1} parent=1 // pred_fallthru
      _
    // Predicated region
    $region18: #{tpu_custom_call.1} parent=1 // pred_check
      _
    $region19: #{tpu_custom_call.1} parent=1 // pred_check_branch
      %53 = sbr.rel (0) target = $region21
    $region20: #{tpu_custom_call.1} parent=1 // pred_region
      %55 = dma.done [#allocation6], 256
    $region21: #{tpu_custom_call.1} parent=1 // pred_fallthru
      _
    // Predicated region
    $region22: #{tpu_custom_call.1} parent=1 // pred_check
      _
    $region23: #{tpu_custom_call.1} parent=1 // pred_check_branch
      %57 = sbr.rel (0) target = $region25
    $region24: #{tpu_custom_call.1} parent=1 // pred_region
      %59 = dma.done [#allocation6], 256
    $region25: #{tpu_custom_call.1} parent=1 // pred_fallthru
      _
    %v60 = vld [vmem:[#allocation5] sm:$0xff]
    %v61 = vld [vmem:[#allocation5 + $0x8] sm:$0xff]
    %v62 = vld [vmem:[#allocation7] sm:$0xff]
    %v63 = vld [vmem:[#allocation7 + $0x8] sm:$0xff]
    %v64 = vsub.f32 %v60, %v62
    %v65 = vsub.f32 %v61, %v63
    %v66 = vld [vmem:[#allocation2] sm:$0xff]
    %v67 = vmul.f32 %v64, %v66
    %v68 = vmul.f32 %v65, %v66
    %v69 = vadd.f32 %v67, %v68
    %70 = vadd.xlane.f32.xlu0 %v69
    %v71 = vpop.xlane.xlu0 %70
    %v72 = vrot.slane %v71, 4
    %v73 = vadd.f32 %v71, %v72
    %v74 = vrot.slane %v73, 2
    %v75 = vadd.f32 %v73, %v74
    %v76 = vrot.slane %v75, 1
    %v77 = vadd.f32 %v75, %v76
    %s78 = vtos %v77
    %v79 = vrcp.pop 2.0
    %v80 = vmul.f32 2.0, %v79
    %v81 = vsub.f32 1.0, %v80
    %v82 = vmul.f32 %v79, %v81
    %v83 = vadd.f32 %v79, %v82
    %vm84 = vweird.f32 %v79
    %v85 = vsel %vm84, %v79, %v83
    %s86 = vtos %v85
    %s87 = smul.f32 %s78, %s86
    %s88 = ssub.f32 0.0, %s87
    %s89 = smul.f32 %s88, %s87
    %v90 = vstv %s89
    %vm91 = vcmask 0
    %92 = vst.msk [vmem:[#allocation8] sm:$0x1] %vm91, %v90
    // Predicated region
    $region26: #{tpu_custom_call.1} parent=1 // pred_check
      _
    $region27: #{tpu_custom_call.1} parent=1 // pred_check_branch
      %94 = sbr.rel (0) target = $region29
    $region28: #{tpu_custom_call.1} parent=1 // pred_region
      %96 = vsyncadd [#allocation4], 0
      %s98 = sshll.u32 [#allocation8], 4
      %s99 = int_to_ptr.vmem [resolvable:$true] %s98
      %s100 = sshll.u32 %s3, 4
      %s101 = int_to_ptr.hbm [resolvable:$true] %s100
      %103 = dma.vmem_to_hbm [thread:$0]  %s99, 16, %s101, [#allocation4]
    $region29: #{tpu_custom_call.1} parent=1 // pred_fallthru
      _
    // Predicated region
    $region30: #{tpu_custom_call.1} parent=1 // pred_check
      _
    $region31: #{tpu_custom_call.1} parent=1 // pred_check_branch
      %105 = sbr.rel (0) target = $region33
    $region32: #{tpu_custom_call.1} parent=1 // pred_region
      %107 = dma.done [#allocation4], 16
    $region33: #{tpu_custom_call.1} parent=1 // pred_fallthru
      _
    %108 = vsyncpa [#allocation3], 1
    %109 = vsyncpa [#allocation6], 1
    %110 = vsyncpa [#allocation4], 1

</llo_original>
